<compile_context>
chip_gen: v7x
topology: tpu7x:2x2x1
jax: 0.10.0
libtpu: 0.0.40
codegen_flags: <defaults>
</compile_context>

<pallas_src>
import math

import jax
import jax.numpy as jnp
from jax.experimental import pallas as pl
from jax.experimental.pallas import tpu as pltpu


def _round_up(x, m):
    return ((x + m - 1) // m) * m


def _pad2(a, rows, cols):
    r, c = a.shape
    return jnp.pad(a, ((0, rows - r), (0, cols - c)))


def _full_spec(shape):
    # Whole array as a single block (grid = ()): index_map takes no args.
    return pl.BlockSpec(shape, lambda: (0,) * len(shape))


# ---------------------------------------------------------------------------
# Single-step cell kernels (grid = ()): everything resident in VMEM.
# ---------------------------------------------------------------------------

def _fused_cell_kernel(xc_ref, wc_ref, b_ref, o_ref):
    # One MXU matmul over the concatenated K axis, bias add, tanh (f32 acc).
    acc = jnp.dot(xc_ref[...], wc_ref[...], preferred_element_type=jnp.float32)
    o_ref[...] = jnp.tanh(acc + b_ref[...]).astype(o_ref.dtype)


def _fused_cell_bcast_h_kernel(x_ref, w_ref, h1_ref, u_ref, b_ref, o_ref):
    # h_prev has a single row: compute its (1,H) contribution ONCE and let the
    # add broadcast it over the batch (no (B,H) HBM materialization, no B-fold
    # recomputation of the same MXU row).
    i2h = jnp.dot(x_ref[...], w_ref[...], preferred_element_type=jnp.float32)
    h2h = jnp.dot(h1_ref[...], u_ref[...], preferred_element_type=jnp.float32)
    o_ref[...] = jnp.tanh(i2h + h2h + b_ref[...]).astype(o_ref.dtype)


def vanilla_rnn_cell(x, W, U, b, h_prev=None):
    """Pallas forward pass equivalent to VanillaRNNCell.forward.

    x: [B, input_size], W: [input_size, H], U: [H*grid_dim, H], b: [1, H].
    h_prev: optional [B, H*grid_dim] or torch-broadcastable [1, H*grid_dim];
    None means the zero `init_state` buffer.  Returns [B, H].
    """
    B, In = x.shape
    H = W.shape[1]
    Hu = U.shape[0]
    Bp = _round_up(B, 8)        # sublane-dense rows
    Hp = _round_up(H, 128)      # lane-dense output / MXU N
    b_p = _pad2(b, 1, Hp)
    out_shape = jax.ShapeDtypeStruct((Bp, Hp), x.dtype)

    if h_prev is not None and h_prev.shape[0] == 1 and B > 1:
        # torch broadcasts the (1,H) h2h result over the batch in the add.
        Inp = _round_up(In, 128)
        Hup = _round_up(Hu, 128)
        x_p = _pad2(x, Bp, Inp)
        W_p = _pad2(W, Inp, Hp)
        h1_p = _pad2(h_prev.astype(x.dtype), 1, Hup)
        U_p = _pad2(U, Hup, Hp)
        out = pl.pallas_call(
            _fused_cell_bcast_h_kernel,
            out_shape=out_shape,
            in_specs=[_full_spec(x_p.shape), _full_spec(W_p.shape),
                      _full_spec(h1_p.shape), _full_spec(U_p.shape),
                      _full_spec(b_p.shape)],
            out_specs=_full_spec((Bp, Hp)),
        )(x_p, W_p, h1_p, U_p, b_p)
        return out[:B, :H]

    if h_prev is None:
        # init_state is zeros((1,H)) -> h2h == 0: skip the h path entirely.
        xc, wc = x, W
    else:
        # Fuse the two matmuls: [x | h_prev] @ [[W], [U]].
        xc = jnp.concatenate([x, h_prev.astype(x.dtype)], axis=1)
        wc = jnp.concatenate([W, U], axis=0)

    Kp = _round_up(xc.shape[1], 128)
    xc_p = _pad2(xc, Bp, Kp)
    wc_p = _pad2(wc, Kp, Hp)
    out = pl.pallas_call(
        _fused_cell_kernel,
        out_shape=out_shape,
        in_specs=[_full_spec(xc_p.shape), _full_spec(wc_p.shape),
                  _full_spec(b_p.shape)],
        out_specs=_full_spec((Bp, Hp)),
    )(xc_p, wc_p, b_p)
    return out[:B, :H]


# ---------------------------------------------------------------------------
# Whole-sequence kernel: grid=(T,), hidden state resident in VMEM scratch,
# weights/bias loaded once.  The fused LHS [x_t | h_{t-1}] lives in a single
# scratch buffer so each step is ONE MXU matmul.
# ---------------------------------------------------------------------------

def _rnn_seq_kernel(x_ref, wcat_ref, b_ref, h0_ref, o_ref, xh_ref):
    t = pl.program_id(0)
    kin = x_ref.shape[1]    # padded input_size (static)
    hp = o_ref.shape[1]     # padded hidden     (static)

    @pl.when(t == 0)
    def _():
        # Initialize the resident hidden state once.
        xh_ref[:, pl.ds(kin, hp)] = h0_ref[...].astype(jnp.float32)

    # Stage x_t next to h_{t-1} -> one fused (Bp, kin+hp) @ (kin+hp, hp) dot.
    xh_ref[:, pl.ds(0, kin)] = x_ref[...].astype(jnp.float32)
    h_new = jnp.tanh(
        jnp.dot(xh_ref[...], wcat_ref[...], preferred_element_type=jnp.float32)
        + b_ref[...])
    xh_ref[:, pl.ds(kin, hp)] = h_new           # stays in VMEM for step t+1
    o_ref[...] = h_new.astype(o_ref.dtype)


def vanilla_rnn_sequence(xs, W, U, b, h0=None):
    """Run the whole RNN over xs: [T, B, input_size] in ONE pallas_call.

    Returns all hidden states, shape [T, B, H].  Requires U.shape[0] == H
    (grid_dim == 1) so the recurrence is well-defined.
    """
    T, B, In = xs.shape
    H = W.shape[1]
    assert U.shape[0] == H, "sequence mode needs grid_dim == 1 (U: [H, H])"
    Bp = _round_up(B, 8)
    Inp = _round_up(In, 128)
    Hp = _round_up(H, 128)

    xs_p = jnp.pad(xs, ((0, 0), (0, Bp - B), (0, Inp - In)))
    wcat = jnp.concatenate([_pad2(W, Inp, Hp), _pad2(U, Hp, Hp)], axis=0)
    b_p = _pad2(b, 1, Hp)
    if h0 is None:
        h0 = jnp.zeros((B, H), xs.dtype)        # the module's init_state buffer
    h0_p = _pad2(h0.astype(xs.dtype), Bp, Hp)

    out = pl.pallas_call(
        _rnn_seq_kernel,
        out_shape=jax.ShapeDtypeStruct((T, Bp, Hp), xs.dtype),
        grid=(T,),
        in_specs=[
            pl.BlockSpec((None, Bp, Inp), lambda t: (t, 0, 0)),  # x_t streamed
            pl.BlockSpec((Inp + Hp, Hp), lambda t: (0, 0)),      # [W;U] loaded once
            pl.BlockSpec((1, Hp), lambda t: (0, 0)),             # bias loaded once
            pl.BlockSpec((Bp, Hp), lambda t: (0, 0)),            # h0 loaded once
        ],
        out_specs=pl.BlockSpec((None, Bp, Hp), lambda t: (t, 0, 0)),
        scratch_shapes=[pltpu.VMEM((Bp, Inp + Hp), jnp.float32)],
        # True recurrence across time steps -> must stay sequential.
        compiler_params=pltpu.CompilerParams(
            dimension_semantics=("arbitrary",)),
    )(xs_p, wcat, b_p, h0_p)
    return out[:, :B, :H]


# ---------------------------------------------------------------------------
# Param init (matches torch xavier_normal_ on >=2-D params) and references.
# ---------------------------------------------------------------------------

def _xavier_normal(key, shape, dtype=jnp.float32):
    fan_in, fan_out = shape[0], shape[1]
    std = math.sqrt(2.0 / (fan_in + fan_out))
    return std * jax.random.normal(key, shape, dtype=dtype)


def init_vanilla_rnn_params(key, input_size, hidden_size, grid_dim=1):
    kW, kU, kb = jax.random.split(key, 3)
    W = _xavier_normal(kW, (input_size, hidden_size))
    U = _xavier_normal(kU, (hidden_size * grid_dim, hidden_size))
    b = _xavier_normal(kb, (1, hidden_size))   # (1,H) -> ndim>=2 -> xavier
    return W, U, b


def _cell_reference(x, W, U, b, h_prev):
    return jnp.tanh(x @ W + h_prev @ U + b)


def _seq_reference(xs, W, U, b, h0):
    def step(h, x_t):
        h = jnp.tanh(x_t @ W + h @ U + b)
        return h, h
    _, hs = jax.lax.scan(step, h0, xs)
    return hs


if __name__ == "__main__":
    key = jax.random.PRNGKey(0)
    k_param, k_x, k_h, k_h1, k_seq = jax.random.split(key, 5)

    batch, input_size, hidden_size, seq_len = 2, 4, 32, 8
    W, U, b = init_vanilla_rnn_params(k_param, input_size, hidden_size)

    x = jax.random.normal(k_x, (batch, input_size), dtype=jnp.float32)
    h_prev = jax.random.normal(k_h, (batch, hidden_size), dtype=jnp.float32)
    h_row = jax.random.normal(k_h1, (1, hidden_size), dtype=jnp.float32)
    xs = jax.random.normal(k_seq, (seq_len, batch, input_size), dtype=jnp.float32)

    # 1) explicit (B, H) previous hidden state  (fused single-matmul path)
    out = vanilla_rnn_cell(x, W, U, b, h_prev)
    jax.block_until_ready(out)
    ref = _cell_reference(x, W, U, b, h_prev)
    assert out.shape == (batch, hidden_size)
    assert jnp.allclose(out, ref, atol=1e-4, rtol=1e-4)

    # 2) default init_state (zeros) path: h-matmul skipped entirely
    out0 = vanilla_rnn_cell(x, W, U, b, None)
    jax.block_until_ready(out0)
    ref0 = _cell_reference(x, W, U, b, jnp.zeros((1, hidden_size), jnp.float32))
    assert jnp.allclose(out0, ref0, atol=1e-4, rtol=1e-4)

    # 3) torch-style (1, H) h_prev broadcast over the batch (no HBM broadcast)
    out1 = vanilla_rnn_cell(x, W, U, b, h_row)
    jax.block_until_ready(out1)
    ref1 = _cell_reference(x, W, U, b, h_row)
    assert jnp.allclose(out1, ref1, atol=1e-4, rtol=1e-4)

    # 4) whole sequence in ONE pallas_call (hidden state resident in VMEM)
    hs = vanilla_rnn_sequence(xs, W, U, b)
    jax.block_until_ready(hs)
    hs_ref = _seq_reference(xs, W, U, b, jnp.zeros((batch, hidden_size), jnp.float32))
    assert hs.shape == (seq_len, batch, hidden_size)
    assert jnp.allclose(hs, hs_ref, atol=1e-4, rtol=1e-4)

    print("KERNEL_OK")
</pallas_src>

<mosaic_0001>
module attributes {stable_mosaic.version = 11 : i64} {
  func.func @_fused_cell_kernel(%arg0: memref<8x128xf32, #tpu.memory_space<vmem>>, %arg1: memref<128x128xf32, #tpu.memory_space<vmem>>, %arg2: memref<1x128xf32, #tpu.memory_space<vmem>>, %arg3: memref<8x128xf32, #tpu.memory_space<vmem>>) attributes {dimension_semantics = [], scalar_prefetch = 0 : i64, scratch_operands = 0 : i64, tpu.core_type = #tpu.core_type<tc>} {
    %c0 = arith.constant 0 : index
    %c0_0 = arith.constant 0 : index
    %0 = vector.load %arg0[%c0, %c0_0] : memref<8x128xf32, #tpu.memory_space<vmem>>, vector<8x128xf32>
    %c0_1 = arith.constant 0 : index
    %c0_2 = arith.constant 0 : index
    %1 = vector.load %arg1[%c0_1, %c0_2] : memref<128x128xf32, #tpu.memory_space<vmem>>, vector<128x128xf32>
    %cst = arith.constant dense<0.000000e+00> : vector<8x128xf32>
    %2 = tpu.matmul %0, %1, %cst {dimension_numbers = #tpu.dot_dimension_numbers<[1], [0], [0], [1], [0, 0, 1, 1], [], []>} : vector<8x128xf32>, vector<128x128xf32>, vector<8x128xf32> -> vector<8x128xf32>
    %c0_3 = arith.constant 0 : index
    %c0_4 = arith.constant 0 : index
    %3 = vector.load %arg2[%c0_3, %c0_4] : memref<1x128xf32, #tpu.memory_space<vmem>>, vector<1x128xf32>
    %4 = vector.broadcast %3 : vector<1x128xf32> to vector<8x128xf32>
    %5 = arith.addf %2, %4 : vector<8x128xf32>
    %6 = math.tanh %5 : vector<8x128xf32>
    %c0_5 = arith.constant 0 : index
    %c0_6 = arith.constant 0 : index
    %7 = vector.load %arg3[%c0_5, %c0_6] : memref<8x128xf32, #tpu.memory_space<vmem>>, vector<8x128xf32>
    tpu.vector_store %arg3[%c0_5, %c0_6], %6 {strides = array<i32>} : memref<8x128xf32, #tpu.memory_space<vmem>>, vector<8x128xf32>,
    return
  }
}

</mosaic_0001>

<llo_original>
// kernel: tpu_custom_call.1
$region0: #{tpu_custom_call.1}
  #allocation0 [shape = 'u32[]', space=smem, size = 0x4, offset = 0x4, fixed_abs, tag = 'smem constant byte address 0x4 - core index']
  #allocation1 [shape = 'u32[144,128]{1,0:T(1,128)}', space=vmem, size = 0x12000, scoped, tag = 'internal scratch']
  %s0 = inlined_call_operand.hbm [shape: f32[8,128], index: 0, kind: input, shape index: {}]
  %s1 = inlined_call_operand.hbm [shape: f32[128,128], index: 1, kind: input, shape index: {}]
  %s2 = inlined_call_operand.vmem [shape: f32[1,128], index: 2, kind: input, shape index: {}]
  %s3 = inlined_call_operand.hbm [shape: f32[8,128], index: 3, kind: output, shape index: {}]
  %s4 = sld [smem:[#allocation0]]
  $region30: #{tpu_custom_call.1} parent=0
    _
  %s6 = ssub.s32 1, %s4
  %s7 = scalar_select 0, %s6, %s4
  $region1: #{tpu_custom_call.1} parent=0
    #allocation2 [shape = 'u8[4096]{0}', space=vmem, size = 0x1000, scoped, tag = 'input window, operand 0, single buffered']
    #allocation3 [shape = 's32[1]{0}', space=sflag, size = 0x4, scoped, tag = 'scoped memory for tpu_custom_call.1']
    #allocation4 [shape = 's32[1]{0}', space=sflag, size = 0x4, scoped, tag = 'scoped memory for tpu_custom_call.1']
    #allocation5 [shape = 'u8[65536]{0}', space=vmem, size = 0x10000, scoped, tag = 'input window, operand 1, single buffered']
    #allocation6 [shape = 's32[1]{0}', space=sflag, size = 0x4, scoped, tag = 'scoped memory for tpu_custom_call.1']
    #allocation7 [shape = 'u8[4096]{0}', space=vmem, size = 0x1000, scoped, tag = 'output window, operand 0, single buffered']
    %8 = vsyncpa [#allocation3], 0
    %9 = vsyncpa [#allocation6], 0
    %10 = vsyncpa [#allocation4], 0
    // Predicated region
    $region2: #{tpu_custom_call.1} parent=1 // pred_check
      _
    $region3: #{tpu_custom_call.1} parent=1 // pred_check_branch
      %12 = sbr.rel (0) target = $region5
    $region4: #{tpu_custom_call.1} parent=1 // pred_region
      %s14 = ssub.s32 128, 128
      %15 = vsyncadd [#allocation3], %s14
      %s17 = sshll.u32 [#allocation2], 4
      %s18 = int_to_ptr.vmem [resolvable:$true] %s17
      %20 = dma.hbm_to_vmem [thread:$0]  %s0, 128, %s18, [#allocation3]
    $region5: #{tpu_custom_call.1} parent=1 // pred_fallthru
      _
    // Predicated region
    $region6: #{tpu_custom_call.1} parent=1 // pred_check
      _
    $region7: #{tpu_custom_call.1} parent=1 // pred_check_branch
      %22 = sbr.rel (0) target = $region9
    $region8: #{tpu_custom_call.1} parent=1 // pred_region
      %s24 = ssub.s32 2048, 2048
      %25 = vsyncadd [#allocation6], %s24
      %s26 = sshll.u32 [#allocation5], 4
      %s27 = int_to_ptr.vmem [resolvable:$true] %s26
      %32 = dma.hbm_to_vmem [thread:$0]  %s1, 2048, %s27, [#allocation6], 128, 128, 8
    $region9: #{tpu_custom_call.1} parent=1 // pred_fallthru
      _
    // Predicated region
    $region10: #{tpu_custom_call.1} parent=1 // pred_check
      _
    $region11: #{tpu_custom_call.1} parent=1 // pred_check_branch
      %34 = sbr.rel (0) target = $region13
    $region12: #{tpu_custom_call.1} parent=1 // pred_region
      _
    $region13: #{tpu_custom_call.1} parent=1 // pred_fallthru
      _
    // Predicated region
    $region14: #{tpu_custom_call.1} parent=1 // pred_check
      _
    $region15: #{tpu_custom_call.1} parent=1 // pred_check_branch
      %36 = sbr.rel (0) target = $region17
    $region16: #{tpu_custom_call.1} parent=1 // pred_region
      %37 = dma.done [#allocation3], 128
    $region17: #{tpu_custom_call.1} parent=1 // pred_fallthru
      _
    // Predicated region
    $region18: #{tpu_custom_call.1} parent=1 // pred_check
      _
    $region19: #{tpu_custom_call.1} parent=1 // pred_check_branch
      %39 = sbr.rel (0) target = $region21
    $region20: #{tpu_custom_call.1} parent=1 // pred_region
      %40 = dma.done [#allocation6], 2048
    $region21: #{tpu_custom_call.1} parent=1 // pred_fallthru
      _
    %v41 = vld [vmem:[#allocation2] sm:$0xff]
    %v42 = vld [vmem:[#allocation5] sm:$0xff]
    %v43 = vld [vmem:[#allocation5 + $0x8] sm:$0xff]
    %v44 = vld [vmem:[#allocation5 + $0x10] sm:$0xff]
    %v45 = vld [vmem:[#allocation5 + $0x18] sm:$0xff]
    %v46 = vld [vmem:[#allocation5 + $0x20] sm:$0xff]
    %v47 = vld [vmem:[#allocation5 + $0x28] sm:$0xff]
    %v48 = vld [vmem:[#allocation5 + $0x30] sm:$0xff]
    %v49 = vld [vmem:[#allocation5 + $0x38] sm:$0xff]
    %v50 = vld [vmem:[#allocation5 + $0x40] sm:$0xff]
    %v51 = vld [vmem:[#allocation5 + $0x48] sm:$0xff]
    %v52 = vld [vmem:[#allocation5 + $0x50] sm:$0xff]
    %v53 = vld [vmem:[#allocation5 + $0x58] sm:$0xff]
    %v54 = vld [vmem:[#allocation5 + $0x60] sm:$0xff]
    %v55 = vld [vmem:[#allocation5 + $0x68] sm:$0xff]
    %v56 = vld [vmem:[#allocation5 + $0x70] sm:$0xff]
    %v57 = vld [vmem:[#allocation5 + $0x78] sm:$0xff]
    %v58 = vld [vmem:[%s2] sm:$0x1]
    %v60 = vlaneseq
    %v61 = vshrl.u32 %v60, 7
    %v62 = vsub.s32 0, %v61
    %v63 = vrot.slane %v58, %v62
    %65 = vmatprep.subr.mxu0 0.0
    %66 = vmatpush1.msra.mxu0 %v42
    %67 = vmatprep.subr.mxu0 0.0
    %68 = vmatpush1.msra.mxu0 %v43
    %69 = vmatprep.subr.mxu0 0.0
    %70 = vmatpush1.msra.mxu0 %v44
    %71 = vmatprep.subr.mxu0 0.0
    %72 = vmatpush1.msra.mxu0 %v45
    %73 = vmatprep.subr.mxu0 0.0
    %74 = vmatpush1.msra.mxu0 %v46
    %75 = vmatprep.subr.mxu0 0.0
    %76 = vmatpush1.msra.mxu0 %v47
    %77 = vmatprep.subr.mxu0 0.0
    %78 = vmatpush1.msra.mxu0 %v48
    %79 = vmatprep.subr.mxu0 0.0
    %80 = vmatpush1.msra.mxu0 %v49
    %81 = vmatprep.subr.mxu0 0.0
    %82 = vmatpush1.msra.mxu0 %v50
    %83 = vmatprep.subr.mxu0 0.0
    %84 = vmatpush1.msra.mxu0 %v51
    %85 = vmatprep.subr.mxu0 0.0
    %86 = vmatpush1.msra.mxu0 %v52
    %87 = vmatprep.subr.mxu0 0.0
    %88 = vmatpush1.msra.mxu0 %v53
    %89 = vmatprep.subr.mxu0 0.0
    %90 = vmatpush1.msra.mxu0 %v54
    %91 = vmatprep.subr.mxu0 0.0
    %92 = vmatpush1.msra.mxu0 %v55
    %93 = vmatprep.subr.mxu0 0.0
    %94 = vmatpush1.msra.mxu0 %v56
    %95 = vmatprep.subr.mxu0 0.0
    %96 = vmatpush1.msra.mxu0 %v57
    %97 = vmatprep.subr.mxu0 0.0
    %98 = vmatpush1.msra.mxu0 0.0
    %99 = vmatprep.subr.mxu0 0.0
    %100 = vmatpush1.msra.mxu0 0.0
    %101 = vmatprep.subr.mxu0 0.0
    %102 = vmatpush1.msra.mxu0 0.0
    %103 = vmatprep.subr.mxu0 0.0
    %104 = vmatpush1.msra.mxu0 0.0
    %105 = vmatprep.subr.mxu0 0.0
    %106 = vmatpush1.msra.mxu0 0.0
    %107 = vmatprep.subr.mxu0 0.0
    %108 = vmatpush1.msra.mxu0 0.0
    %109 = vmatprep.subr.mxu0 0.0
    %110 = vmatpush1.msra.mxu0 0.0
    %111 = vmatprep.subr.mxu0 0.0
    %112 = vmatpush1.msra.mxu0 0.0
    %113 = vmatprep.subr.mxu0 0.0
    %114 = vmatpush1.msra.mxu0 0.0
    %115 = vmatprep.subr.mxu0 0.0
    %116 = vmatpush1.msra.mxu0 0.0
    %117 = vmatprep.subr.mxu0 0.0
    %118 = vmatpush1.msra.mxu0 0.0
    %119 = vmatprep.subr.mxu0 0.0
    %120 = vmatpush1.msra.mxu0 0.0
    %121 = vmatprep.subr.mxu0 0.0
    %122 = vmatpush1.msra.mxu0 0.0
    %123 = vmatprep.subr.mxu0 0.0
    %124 = vmatpush1.msra.mxu0 0.0
    %125 = vmatprep.subr.mxu0 0.0
    %126 = vmatpush1.msra.mxu0 0.0
    %127 = vmatprep.subr.mxu0 0.0
    %128 = vmatpush1.msra.mxu0 0.0
    %129 = vmatprep.mubr.f32.mxu0 0.0
    %130 = vmatmul.mubr.f32.gmra.mrb[0].mxu0 %v41
    %v131 = vpop.f32.mrb[0].mxu0
    %v132 = vadd.f32 %v63, %v131
    %v133 = vpop.f32.mrb[0].mxu0
    %134 = vdwg.mxu0
    %v135 = vtanh.pop %v132
    %136 = vst [vmem:[#allocation7] sm:$0xff] %v135
    // Predicated region
    $region22: #{tpu_custom_call.1} parent=1 // pred_check
      _
    $region23: #{tpu_custom_call.1} parent=1 // pred_check_branch
      %138 = sbr.rel (0) target = $region25
    $region24: #{tpu_custom_call.1} parent=1 // pred_region
      %s140 = ssub.s32 128, 128
      %141 = vsyncadd [#allocation4], %s140
      %s143 = sshll.u32 [#allocation7], 4
      %s144 = int_to_ptr.vmem [resolvable:$true] %s143
      %146 = dma.vmem_to_hbm [thread:$0]  %s144, 128, %s3, [#allocation4]
    $region25: #{tpu_custom_call.1} parent=1 // pred_fallthru
      _
    // Predicated region
    $region26: #{tpu_custom_call.1} parent=1 // pred_check
      _
    $region27: #{tpu_custom_call.1} parent=1 // pred_check_branch
      %148 = sbr.rel (0) target = $region29
    $region28: #{tpu_custom_call.1} parent=1 // pred_region
      %149 = dma.done [#allocation4], 128
    $region29: #{tpu_custom_call.1} parent=1 // pred_fallthru
      _
    %150 = vsyncpa [#allocation3], 1
    %151 = vsyncpa [#allocation6], 1
    %152 = vsyncpa [#allocation4], 1

</llo_original>
